<compile_context>
chip_gen: v6e
topology: v6e:2x2x1
jax: 0.10.0
libtpu: 0.0.40
codegen_flags: <defaults>
</compile_context>

<pallas_src>
import functools

import jax
import jax.numpy as jnp
import numpy as np
from jax.experimental import pallas as pl
from jax.experimental.pallas import tpu as pltpu


def find_pad(filter_size):
    """Same as the PyTorch FindPad helper."""
    a = (np.array(filter_size) - 1) // 2
    if isinstance(filter_size, tuple):
        return tuple(int(v) for v in a)
    return int(a)


def _triple(v):
    return tuple(v) if isinstance(v, (tuple, list)) else (v, v, v)


def _round_up(x, m):
    return ((x + m - 1) // m) * m


def _cdiv(a, b):
    return (a + b - 1) // b


# ------------------------- Pallas kernel -------------------------
def _strided_conv_kernel(w_ref, p_ref, o_ref):
    """One (batch, M-tile) block of the strided conv as a single MXU matmul.

    w_ref: (Cout, Kp)     flattened conv weight; bias folded in as column K
    p_ref: (Kp, tile_m)   im2col patch tile; row K is ones (bias), rows > K are 0
    o_ref: (Cout, tile_m) lane-dense output tile
    """
    o_ref[...] = jnp.dot(
        w_ref[...], p_ref[...], preferred_element_type=jnp.float32
    ).astype(o_ref.dtype)


# ------------------------- wrapper -------------------------
def stride_conv_wrapper(x, w, b, stride, pad, *, tile_m=4096,
                        compute_dtype=jnp.bfloat16):
    """Forward of StrideConvWrapper: y = Conv3d(x; w, b, stride, pad).

    x: (N, Cin, D, H, W)   w: (Cout, Cin, KD, KH, KW)   b: (Cout,)
    Returns (N, Cout, Do, Ho, Wo), matching PyTorch NCDHW.
    """
    N, Cin, D, H, W = x.shape
    Cout, _, KD, KH, KW = w.shape
    sd, sh, sw = stride
    pd, ph, pw = pad

    Do = (D + 2 * pd - KD) // sd + 1
    Ho = (H + 2 * ph - KH) // sh + 1
    Wo = (W + 2 * pw - KW) // sw + 1
    K = Cin * KD * KH * KW
    M_sp = Do * Ho * Wo

    # --- glue: zero-pad + strided im2col, batch-leading (N, K, M) layout ---
    # TODO(synk): replace with an in-kernel strided DMA gather (pl.ANY input).
    xp = jnp.pad(x, ((0, 0), (0, 0), (pd, pd), (ph, ph), (pw, pw)))
    taps = [xp[:, :,
               kd:kd + sd * Do:sd,
               kh:kh + sh * Ho:sh,
               kw:kw + sw * Wo:sw]
            for kd in range(KD) for kh in range(KH) for kw in range(KW)]
    # (N, Cin, T, Do, Ho, Wo) -> (N, Cin*T, Do*Ho*Wo) is a pure reshape; K order
    # (cin, kd, kh, kw) matches the PyTorch weight flatten -> no HBM transpose.
    patches = jnp.stack(taps, axis=2).reshape(N, K, M_sp).astype(compute_dtype)

    # Pad K only to the dtype sublane pack; first pad row = ones (for the bias).
    pack = 16 if np.dtype(compute_dtype).itemsize == 2 else 8
    Kp = _round_up(K + 1, pack)
    pad_rows = Kp - K - 1
    pieces = [patches, jnp.ones((N, 1, M_sp), compute_dtype)]
    if pad_rows:
        pieces.append(jnp.zeros((N, pad_rows, M_sp), compute_dtype))
    patches = jnp.concatenate(pieces, axis=1)

    # Tile M; keep >= 4 total grid steps (2 TensorCores on v7x + double-buffer).
    tile_m = max(128, min(tile_m, _round_up(M_sp, 128)))
    tile_m = _round_up(tile_m, 128)
    while N * _cdiv(M_sp, tile_m) < 4 and tile_m >= 256:
        tile_m = _round_up(tile_m // 2, 128)
    num_m_tiles = _cdiv(M_sp, tile_m)
    Mp_sp = num_m_tiles * tile_m
    if Mp_sp != M_sp:
        patches = jnp.pad(patches, ((0, 0), (0, 0), (0, Mp_sp - M_sp)))

    # PyTorch weight (Cout, Cin, KD, KH, KW) flattens to the same K order; the
    # bias becomes an extra column that meets the ones-row of `patches`.
    w_pieces = [w.reshape(Cout, K), b.reshape(Cout, 1)]
    if pad_rows:
        w_pieces.append(jnp.zeros((Cout, pad_rows), w.dtype))
    w2d = jnp.concatenate(w_pieces, axis=1).astype(compute_dtype)

    grid = (N, num_m_tiles)
    out3d = pl.pallas_call(
        _strided_conv_kernel,
        out_shape=jax.ShapeDtypeStruct((N, Cout, Mp_sp), x.dtype),
        grid_spec=pltpu.PrefetchScalarGridSpec(
            num_scalar_prefetch=0,
            grid=grid,
            in_specs=[
                # weight+bias: constant index_map -> DMA'd once, VMEM-resident
                pl.BlockSpec((Cout, Kp), lambda n, i: (0, 0)),
                # patch tile: squeezed batch dim, pipelined along M
                pl.BlockSpec((None, Kp, tile_m), lambda n, i: (n, 0, i)),
            ],
            out_specs=pl.BlockSpec((None, Cout, tile_m), lambda n, i: (n, 0, i)),
        ),
        compiler_params=pltpu.CompilerParams(
            dimension_semantics=("parallel", "parallel"),
            vmem_limit_bytes=32 * 1024 * 1024,
        ),
    )(w2d, patches)

    return out3d[:, :, :M_sp].reshape(N, Cout, Do, Ho, Wo)


# ------------------------- pure-JAX reference -------------------------
def _stride_conv_ref(x, w, b, stride, pad, cast_dtype=None):
    if cast_dtype is not None:
        x = x.astype(cast_dtype)
        w = w.astype(cast_dtype)
        b = b.astype(cast_dtype).astype(jnp.float32)
    y = jax.lax.conv_general_dilated(
        x, w, window_strides=stride,
        padding=[(p, p) for p in pad],
        dimension_numbers=("NCDHW", "OIDHW", "NCDHW"),
        preferred_element_type=jnp.float32)
    return (y + b.reshape(1, -1, 1, 1, 1)).astype(jnp.float32)


if __name__ == "__main__":
    # PAR consistent with the module: 3x3x3 down-conv, stride 2, FindPad(3)=1.
    PAR = {"DownConvKernel": 3, "PoolShape": 2, "TransposeSize": 3}
    channels = 4
    N, D, H, W = 2, 8, 16, 16

    ksize = _triple(PAR["DownConvKernel"])
    stride = _triple(PAR["PoolShape"])
    # NOTE: padding follows the module exactly: FindPad(PAR['TransposeSize']).
    pad = _triple(find_pad(PAR["TransposeSize"]))

    key = jax.random.PRNGKey(0)
    kx, kw, kb = jax.random.split(key, 3)

    fan_in = channels * ksize[0] * ksize[1] * ksize[2]
    scale = 1.0 / float(np.sqrt(fan_in))
    w = jax.random.uniform(kw, (channels, channels) + ksize, jnp.float32,
                           minval=-scale, maxval=scale)
    b = jax.random.uniform(kb, (channels,), jnp.float32,
                           minval=-scale, maxval=scale)
    x = jax.random.normal(kx, (N, channels, D, H, W), jnp.float32)

    fwd = jax.jit(functools.partial(stride_conv_wrapper, stride=stride, pad=pad))
    out = jax.block_until_ready(fwd(x, w, b))

    Do = (D + 2 * pad[0] - ksize[0]) // stride[0] + 1
    Ho = (H + 2 * pad[1] - ksize[1]) // stride[1] + 1
    Wo = (W + 2 * pad[2] - ksize[2]) // stride[2] + 1
    assert out.shape == (N, channels, Do, Ho, Wo), out.shape

    # Reference with the same bf16 input/weight rounding (f32 accumulation).
    ref_bf16 = _stride_conv_ref(x, w, b, stride, pad, cast_dtype=jnp.bfloat16)
    err = float(jnp.max(jnp.abs(out - ref_bf16)))
    assert jnp.allclose(out, ref_bf16, atol=5e-3, rtol=5e-3), err

    # Loose sanity check against the full-f32 reference (bf16 rounding budget).
    ref_f32 = _stride_conv_ref(x, w, b, stride, pad)
    err_f32 = float(jnp.max(jnp.abs(out - ref_f32)))
    assert jnp.allclose(out, ref_f32, atol=5e-2, rtol=5e-2), err_f32

    print("KERNEL_OK")
</pallas_src>

<mosaic_0001>
module attributes {stable_mosaic.version = 11 : i64} {
  func.func @_strided_conv_kernel(%arg0: i32, %arg1: i32, %arg2: memref<4x112xbf16, #tpu.memory_space<vmem>>, %arg3: memref<1x112x128xbf16, #tpu.memory_space<vmem>>, %arg4: memref<1x4x128xf32, #tpu.memory_space<vmem>>) attributes {dimension_semantics = [#tpu.dimension_semantics<parallel>, #tpu.dimension_semantics<parallel>], iteration_bounds = array<i64: 2, 2>, scalar_prefetch = 0 : i64, scratch_operands = 0 : i64, tpu.core_type = #tpu.core_type<tc>, window_params = [{pipeline_mode = #tpu.pipeline_mode<synchronous>, transform_indices = @transform_0, window_bounds = array<i64: 4, 112>}, {transform_indices = @transform_1, window_bounds = array<i64: 1, 112, 128>}, {transform_indices = @transform_2, window_bounds = array<i64: 1, 4, 128>}]} {
    %c0 = arith.constant 0 : index
    %c0_0 = arith.constant 0 : index
    %0 = vector.load %arg2[%c0, %c0_0] : memref<4x112xbf16, #tpu.memory_space<vmem>>, vector<4x112xbf16>
    %c0_1 = arith.constant 0 : index
    %c0_2 = arith.constant 0 : index
    %c0_3 = arith.constant 0 : index
    %1 = vector.load %arg3[%c0_1, %c0_2, %c0_3] : memref<1x112x128xbf16, #tpu.memory_space<vmem>>, vector<1x112x128xbf16>
    %2 = vector.shape_cast %1 : vector<1x112x128xbf16> to vector<112x128xbf16>
    %cst = arith.constant dense<0.000000e+00> : vector<4x128xf32>
    %3 = tpu.matmul %0, %2, %cst {dimension_numbers = #tpu.dot_dimension_numbers<[1], [0], [0], [1], [0, 0, 1, 1], [], []>} : vector<4x112xbf16>, vector<112x128xbf16>, vector<4x128xf32> -> vector<4x128xf32>
    %c0_4 = arith.constant 0 : index
    %c0_5 = arith.constant 0 : index
    %c0_6 = arith.constant 0 : index
    %4 = vector.load %arg4[%c0_4, %c0_5, %c0_6] : memref<1x4x128xf32, #tpu.memory_space<vmem>>, vector<1x4x128xf32>
    %5 = vector.shape_cast %4 : vector<1x4x128xf32> to vector<4x128xf32>
    %6 = vector.shape_cast %3 : vector<4x128xf32> to vector<1x4x128xf32>
    tpu.vector_store %arg4[%c0_4, %c0_5, %c0_6], %6 {strides = array<i32>} : memref<1x4x128xf32, #tpu.memory_space<vmem>>, vector<1x4x128xf32>,
    return
  }
  func.func @transform_0(%arg0: i32, %arg1: i32) -> (i32, i32) {
    %c0_i32 = arith.constant 0 : i32
    %c0_i32_0 = arith.constant 0 : i32
    %c0_i32_1 = arith.constant 0 : i32
    return %c0_i32, %c0_i32_0 : i32, i32
  }
  func.func @transform_1(%arg0: i32, %arg1: i32) -> (i32, i32, i32) {
    %c0_i32 = arith.constant 0 : i32
    %c0_i32_0 = arith.constant 0 : i32
    return %arg0, %c0_i32, %arg1 : i32, i32, i32
  }
  func.func @transform_2(%arg0: i32, %arg1: i32) -> (i32, i32, i32) {
    %c0_i32 = arith.constant 0 : i32
    %c0_i32_0 = arith.constant 0 : i32
    return %arg0, %c0_i32, %arg1 : i32, i32, i32
  }
}

</mosaic_0001>

<llo_original>
// kernel: stride_conv_wrapper.1
$region0: #{stride_conv_wrapper.1}
  #allocation0 [shape = 'u32[]', space=smem, size = 0x4, offset = 0x4, fixed_abs, tag = 'smem constant byte address 0x4 - core index']
  #allocation1 [shape = 'u32[144,128]{1,0:T(1,128)}', space=vmem, size = 0x12000, scoped, tag = 'internal scratch']
  %s0 = inlined_call_operand.vmem [shape: bf16[4,112], index: 0, kind: input, shape index: {}]
  %s1 = inlined_call_operand.vmem [shape: bf16[2,112,256], index: 1, kind: input, shape index: {}]
  %s2 = inlined_call_operand.vmem [shape: f32[2,4,256], index: 2, kind: output, shape index: {}]
  %s3 = sld [smem:[#allocation0]]
  $region82: #{stride_conv_wrapper.1} parent=0
    _
  %s5 = ssub.s32 1, %s3
  %s6 = scalar_select 0, %s5, %s3
  $region1: #{stride_conv_wrapper.1} parent=0
    #allocation2 [shape = 'u8[57344]{0}', space=vmem, size = 0xe000, scoped, tag = 'input window, operand 1']
    loop: start=0, step=1, limit=6
    $region2: #{stride_conv_wrapper.1} parent=1 // loop_pre_header
      _
    $region3: #{stride_conv_wrapper.1} parent=1 // loop_header
      %s8 = sphi 0, %s12
      %p9 = scmp.ge.s32.totalorder %s8, 6
      %s15 = sphi 0, %s27
      %s16 = sphi 0, %s23
      %s17 = sphi 0, %s15
      %s18 = sphi 0, %s16
      %s19 = sphi 0, %s17
      %s20 = sphi 0, %s18
      %s28 = sphi 0, %s28
      %s30 = sphi 0, %s28
      %s31 = sphi 0, %s30
      %s45 = sphi 0, %s31
      %s53 = sphi 0, %s55
      %s56 = sphi 0, %s53
      %s57 = sphi 0, %s56
      %s73 = sphi 0, %s57
      %s81 = sphi 0, %s83
      %s84 = sphi 0, %s81
      %s85 = sphi 0, %s84
      %s101 = sphi 0, %s85
    $region4: #{stride_conv_wrapper.1} parent=1 // loop_header_branch
      %11 = sbr.rel (%p9) target = $region8
    $region5: #{stride_conv_wrapper.1} parent=1 // loop_body
      %s13 = ssub.s32 %s8, 1
      %s14 = ssub.s32 %s8, 2
      %s21 = sadd.s32 1, %s16
      %p22 = scmp.ge.s32.totalorder %s21, 2
      %s23 = scalar_select %p22, 0, %s21
      %s24 = sadd.s32 1, %s15
      %s25 = scalar_select %p22, %s24, %s15
      %p26 = scmp.ge.s32.totalorder %s25, 2
      %s27 = scalar_select %p26, 0, %s25
      %s29 = sadd.s32 %s28, 1
      %p32 = scmp.eq.s32.totalorder %s8, 3
      %p33 = scmp.ne.s32.totalorder %s28, %s30
      %p34 = scmp.eq.s32.totalorder %s8, 0
      %p35 = por %p33, %p34
      %p36 = scmp.ne.s32.totalorder %s28, %s30
      %p37 = scmp.eq.s32.totalorder %s13, 3
      %p38 = por %p36, %p37
      %p39 = scmp.ne.s32.totalorder %s30, %s31
      %p40 = scmp.eq.s32.totalorder %s13, 0
      %p41 = por %p39, %p40
      %p42 = scmp.ne.s32.totalorder %s30, %s31
      %p43 = scmp.eq.s32.totalorder %s14, 3
      %p44 = por %p42, %p43
      %p46 = scmp.ne.s32.totalorder %s31, %s45
      %p47 = scmp.eq.s32.totalorder %s14, 0
      %p48 = por %p46, %p47
      %s49 = ssub.s32 %s15, %s27
      %s50 = ssub.s32 %s16, %s23
      %s51 = sor.u32 %s49, %s50
      %p52 = scmp.eq.s32.totalorder %s51, 0
      %s54 = sadd.s32 %s53, 1
      %s55 = scalar_select %p52, %s53, %s54
      %p58 = pneg %p52
      %p59 = scmp.eq.s32.totalorder %s8, 3
      %p60 = por %p58, %p59
      %p61 = scmp.ne.s32.totalorder %s53, %s56
      %p62 = scmp.eq.s32.totalorder %s8, 0
      %p63 = por %p61, %p62
      %p64 = scmp.ne.s32.totalorder %s53, %s56
      %p65 = scmp.eq.s32.totalorder %s13, 3
      %p66 = por %p64, %p65
      %p67 = scmp.ne.s32.totalorder %s56, %s57
      %p68 = scmp.eq.s32.totalorder %s13, 0
      %p69 = por %p67, %p68
      %p70 = scmp.ne.s32.totalorder %s56, %s57
      %p71 = scmp.eq.s32.totalorder %s14, 3
      %p72 = por %p70, %p71
      %p74 = scmp.ne.s32.totalorder %s57, %s73
      %p75 = scmp.eq.s32.totalorder %s14, 0
      %p76 = por %p74, %p75
      %s77 = ssub.s32 %s15, %s27
      %s78 = ssub.s32 %s16, %s23
      %s79 = sor.u32 %s77, %s78
      %p80 = scmp.eq.s32.totalorder %s79, 0
      %s82 = sadd.s32 %s81, 1
      %s83 = scalar_select %p80, %s81, %s82
      %p86 = pneg %p80
      %p87 = scmp.eq.s32.totalorder %s8, 3
      %p88 = por %p86, %p87
      %p89 = scmp.ne.s32.totalorder %s81, %s84
      %p90 = scmp.eq.s32.totalorder %s8, 0
      %p91 = por %p89, %p90
      %p92 = scmp.ne.s32.totalorder %s81, %s84
      %p93 = scmp.eq.s32.totalorder %s13, 3
      %p94 = por %p92, %p93
      %p95 = scmp.ne.s32.totalorder %s84, %s85
      %p96 = scmp.eq.s32.totalorder %s13, 0
      %p97 = por %p95, %p96
      %p98 = scmp.ne.s32.totalorder %s84, %s85
      %p99 = scmp.eq.s32.totalorder %s14, 3
      %p100 = por %p98, %p99
      %p102 = scmp.ne.s32.totalorder %s85, %s101
      %p103 = scmp.eq.s32.totalorder %s14, 0
      %p104 = por %p102, %p103
      %p105 = scmp.le.s32.totalorder 1, %s8
      %p106 = scmp.lt.s32.totalorder %s8, 5
      %p107 = pnand %p105, %p106
      %p108 = pneg %p107
      // Predicated region
      $region9: #{stride_conv_wrapper.1} parent=5 // pred_check
        _
      $region10: #{stride_conv_wrapper.1} parent=5 // pred_check_branch
        %110 = sbr.rel (%p107) target = $region12
      $region11: #{stride_conv_wrapper.1} parent=5 // pred_region
        %s111 = ssub.s32 %s8, 1
        // Predicated region
        $region13: #{stride_conv_wrapper.1} parent=11 // pred_check
          %p112 = pneg %p41
        $region14: #{stride_conv_wrapper.1} parent=11 // pred_check_branch
          %114 = sbr.rel (%p112) target = $region16
        $region15: #{stride_conv_wrapper.1} parent=11 // pred_region
          _
        $region16: #{stride_conv_wrapper.1} parent=11 // pred_fallthru
          _
      $region12: #{stride_conv_wrapper.1} parent=5 // pred_fallthru
        _
      %p115 = scmp.lt.s32.totalorder %s8, 4
      // Predicated region
      $region17: #{stride_conv_wrapper.1} parent=5 // pred_check
        %p116 = pneg %p115
      $region18: #{stride_conv_wrapper.1} parent=5 // pred_check_branch
        %118 = sbr.rel (%p116) target = $region20
      $region19: #{stride_conv_wrapper.1} parent=5 // pred_region
        // Predicated region
        $region21: #{stride_conv_wrapper.1} parent=19 // pred_check
          %p119 = pneg %p63
        $region22: #{stride_conv_wrapper.1} parent=19 // pred_check_branch
          %121 = sbr.rel (%p119) target = $region24
        $region23: #{stride_conv_wrapper.1} parent=19 // pred_region
          %s122 = sand.u32 %s53, 1
          %s123 = sand.u32 %s53, 1
          %s124 = smul.addr %s123, 56
          %s125 = scalar_lea.vmem [#allocation2], %s124
          %s126 = smul.addr %s15, 28
          %s127 = sadd.s32 %s16, %s126
          %s128 = smul.addr %s127, 4
          %s129 = scalar_lea.vmem %s1, %s128
          // Predicated region
          $region25: #{stride_conv_wrapper.1} parent=23 // pred_check
            _
          $region26: #{stride_conv_wrapper.1} parent=23 // pred_check_branch
            %131 = sbr.rel (0) target = $region28
          $region27: #{stride_conv_wrapper.1} parent=23 // pred_region
            // Predicated region
            $region29: #{stride_conv_wrapper.1} parent=27 // pred_check
              _
            $region30: #{stride_conv_wrapper.1} parent=27 // pred_check_branch
              %133 = sbr.rel target = $region32
            $region31: #{stride_conv_wrapper.1} parent=27 // pred_region
              // Predicated region
              $region44: #{stride_conv_wrapper.1} parent=31 // pred_check
                _
              $region45: #{stride_conv_wrapper.1} parent=31 // pred_check_branch
                %175 = sbr.rel (0) target = $region47
              $region46: #{stride_conv_wrapper.1} parent=31 // pred_region
                loop: start=0, step=1, limit=1
                $region48: #{stride_conv_wrapper.1} parent=46 // loop_pre_header
                  _
                $region49: #{stride_conv_wrapper.1} parent=46 // loop_header
                  %s177 = sphi 0, %s181
                  %p178 = scmp.ge.s32.totalorder %s177, 1
                  %s182 = sphi %s129, %s129
                  %s183 = sphi %s125, %s125
                $region50: #{stride_conv_wrapper.1} parent=46 // loop_header_branch
                  %180 = sbr.rel (%p178) target = $region54
                $region51: #{stride_conv_wrapper.1} parent=46 // loop_body
                  _
                $region52: #{stride_conv_wrapper.1} parent=46 // loop_footer
                  %s181 = sadd.s32 1, %s177
                $region53: #{stride_conv_wrapper.1} parent=46 // loop_footer_branch
                  %176 = sbr.rel target = $region49
                $region54: #{stride_conv_wrapper.1} parent=46 // loop_exit
                  _
                %s185 = ssub.s32 16, 1
                loop: start=0, step=1, limit=1
                $region55: #{stride_conv_wrapper.1} parent=46 // loop_pre_header
                  _
                $region56: #{stride_conv_wrapper.1} parent=46 // loop_header
                  %s187 = sphi 0, %s191
                  %p188 = scmp.ge.s32.totalorder %s187, 1
                  %s192 = sphi %s129, %s129
                  %s193 = sphi %s125, %s125
                $region57: #{stride_conv_wrapper.1} parent=46 // loop_header_branch
                  %190 = sbr.rel (%p188) target = $region61
                $region58: #{stride_conv_wrapper.1} parent=46 // loop_body
                  %v194 = vld [vmem:[%s192] sm:%s185]
                  %195 = vst [vmem:[%s193] sm:%s185] %v194
                  %v196 = vld [vmem:[%s192 + $0x8] sm:%s185]
                  %197 = vst [vmem:[%s193 + $0x4] sm:%s185] %v196
                  %v198 = vld [vmem:[%s192 + $0x10] sm:%s185]
                  %199 = vst [vmem:[%s193 + $0x8] sm:%s185] %v198
                  %v200 = vld [vmem:[%s192 + $0x18] sm:%s185]
                  %201 = vst [vmem:[%s193 + $0xc] sm:%s185] %v200
                  %v202 = vld [vmem:[%s192 + $0x20] sm:%s185]
                  %203 = vst [vmem:[%s193 + $0x10] sm:%s185] %v202
                  %v204 = vld [vmem:[%s192 + $0x28] sm:%s185]
                  %205 = vst [vmem:[%s193 + $0x14] sm:%s185] %v204
                  %v206 = vld [vmem:[%s192 + $0x30] sm:%s185]
                  %207 = vst [vmem:[%s193 + $0x18] sm:%s185] %v206
                  %v208 = vld [vmem:[%s192 + $0x38] sm:%s185]
                  %209 = vst [vmem:[%s193 + $0x1c] sm:%s185] %v208
                  %v210 = vld [vmem:[%s192 + $0x40] sm:%s185]
                  %211 = vst [vmem:[%s193 + $0x20] sm:%s185] %v210
                  %v212 = vld [vmem:[%s192 + $0x48] sm:%s185]
                  %213 = vst [vmem:[%s193 + $0x24] sm:%s185] %v212
                  %v214 = vld [vmem:[%s192 + $0x50] sm:%s185]
                  %215 = vst [vmem:[%s193 + $0x28] sm:%s185] %v214
                  %v216 = vld [vmem:[%s192 + $0x58] sm:%s185]
                  %217 = vst [vmem:[%s193 + $0x2c] sm:%s185] %v216
                  %v218 = vld [vmem:[%s192 + $0x60] sm:%s185]
                  %219 = vst [vmem:[%s193 + $0x30] sm:%s185] %v218
                  %v220 = vld [vmem:[%s192 + $0x68] sm:%s185]
                  %221 = vst [vmem:[%s193 + $0x34] sm:%s185] %v220
                $region59: #{stride_conv_wrapper.1} parent=46 // loop_footer
                  %s191 = sadd.s32 1, %s187
                $region60: #{stride_conv_wrapper.1} parent=46 // loop_footer_branch
                  %186 = sbr.rel target = $region56
                $region61: #{stride_conv_wrapper.1} parent=46 // loop_exit
                  _
              $region47: #{stride_conv_wrapper.1} parent=31 // pred_fallthru
                _
            $region32: #{stride_conv_wrapper.1} parent=27 // pred_fallthru
              _
            // Predicated region
            $region33: #{stride_conv_wrapper.1} parent=27 // pred_check
              _
            $region34: #{stride_conv_wrapper.1} parent=27 // pred_check_branch
              %135 = sbr.rel (0) target = $region36
            $region35: #{stride_conv_wrapper.1} parent=27 // pred_region
              %s137 = ssub.s32 16, 1
              loop: start=0, step=1, limit=1
              $region37: #{stride_conv_wrapper.1} parent=35 // loop_pre_header
                _
              $region38: #{stride_conv_wrapper.1} parent=35 // loop_header
                %s139 = sphi 0, %s143
                %p140 = scmp.ge.s32.totalorder %s139, 1
                %s144 = sphi %s129, %s129
                %s145 = sphi %s125, %s125
              $region39: #{stride_conv_wrapper.1} parent=35 // loop_header_branch
                %142 = sbr.rel (%p140) target = $region43
              $region40: #{stride_conv_wrapper.1} parent=35 // loop_body
                %v146 = vld [vmem:[%s144] sm:%s137]
                %147 = vst [vmem:[%s145] sm:%s137] %v146
                %v148 = vld [vmem:[%s144 + $0x8] sm:%s137]
                %149 = vst [vmem:[%s145 + $0x4] sm:%s137] %v148
                %v150 = vld [vmem:[%s144 + $0x10] sm:%s137]
                %151 = vst [vmem:[%s145 + $0x8] sm:%s137] %v150
                %v152 = vld [vmem:[%s144 + $0x18] sm:%s137]
                %153 = vst [vmem:[%s145 + $0xc] sm:%s137] %v152
                %v154 = vld [vmem:[%s144 + $0x20] sm:%s137]
                %155 = vst [vmem:[%s145 + $0x10] sm:%s137] %v154
                %v156 = vld [vmem:[%s144 + $0x28] sm:%s137]
                %157 = vst [vmem:[%s145 + $0x14] sm:%s137] %v156
                %v158 = vld [vmem:[%s144 + $0x30] sm:%s137]
                %159 = vst [vmem:[%s145 + $0x18] sm:%s137] %v158
                %v160 = vld [vmem:[%s144 + $0x38] sm:%s137]
                %161 = vst [vmem:[%s145 + $0x1c] sm:%s137] %v160
                %v162 = vld [vmem:[%s144 + $0x40] sm:%s137]
                %163 = vst [vmem:[%s145 + $0x20] sm:%s137] %v162
                %v164 = vld [vmem:[%s144 + $0x48] sm:%s137]
                %165 = vst [vmem:[%s145 + $0x24] sm:%s137] %v164
                %v166 = vld [vmem:[%s144 + $0x50] sm:%s137]
                %167 = vst [vmem:[%s145 + $0x28] sm:%s137] %v166
                %v168 = vld [vmem:[%s144 + $0x58] sm:%s137]
                %169 = vst [vmem:[%s145 + $0x2c] sm:%s137] %v168
                %v170 = vld [vmem:[%s144 + $0x60] sm:%s137]
                %171 = vst [vmem:[%s145 + $0x30] sm:%s137] %v170
                %v172 = vld [vmem:[%s144 + $0x68] sm:%s137]
                %173 = vst [vmem:[%s145 + $0x34] sm:%s137] %v172
              $region41: #{stride_conv_wrapper.1} parent=35 // loop_footer
                %s143 = sadd.s32 1, %s139
              $region42: #{stride_conv_wrapper.1} parent=35 // loop_footer_branch
                %138 = sbr.rel target = $region38
              $region43: #{stride_conv_wrapper.1} parent=35 // loop_exit
                _
            $region36: #{stride_conv_wrapper.1} parent=27 // pred_fallthru
              _
          $region28: #{stride_conv_wrapper.1} parent=23 // pred_fallthru
            _
          %222 = vnop
        $region24: #{stride_conv_wrapper.1} parent=19 // pred_fallthru
          _
      $region20: #{stride_conv_wrapper.1} parent=5 // pred_fallthru
        _
      %p223 = scmp.le.s32.totalorder 1, %s8
      %p224 = scmp.lt.s32.totalorder %s8, 5
      %p225 = pnand %p223, %p224
      %p226 = pneg %p225
      // Predicated region
      $region62: #{stride_conv_wrapper.1} parent=5 // pred_check
        _
      $region63: #{stride_conv_wrapper.1} parent=5 // pred_check_branch
        %228 = sbr.rel (%p225) target = $region65
      $region64: #{stride_conv_wrapper.1} parent=5 // pred_region
        %s229 = ssub.s32 %s8, 1
        %s230 = sand.u32 %s56, 1
        %s231 = sand.u32 %s56, 1
        %s232 = smul.addr %s231, 56
        %s233 = scalar_lea.vmem [#allocation2], %s232
        // Predicated region
        $region66: #{stride_conv_wrapper.1} parent=64 // pred_check
          %p234 = pneg %p69
        $region67: #{stride_conv_wrapper.1} parent=64 // pred_check_branch
          %236 = sbr.rel (%p234) target = $region69
        $region68: #{stride_conv_wrapper.1} parent=64 // pred_region
          _
        $region69: #{stride_conv_wrapper.1} parent=64 // pred_fallthru
          _
        %p237 = pneg %p41
        %p238 = pneg %p38
        %s239 = sand.u32 %s56, 1
        %s240 = sand.u32 %s56, 1
        %s241 = smul.addr %s240, 56
        %s242 = scalar_lea.vmem [#allocation2], %s241
        %p243 = pneg %p69
        %p244 = pneg %p66
        %p245 = pneg %p97
        %p246 = pneg %p94
        %p247 = scmp.lt.s32.totalorder %s17, 1
        %s248 = scalar_select %p247, %s17, 1
        %p249 = scmp.lt.s32.totalorder %s18, 1
        %s250 = scalar_select %p249, %s18, 1
        %s251 = smul.addr %s248, 2
        %s252 = sadd.s32 %s250, %s251
        %s253 = smul.addr %s252, 4
        %s254 = scalar_lea.vmem %s2, %s253
        %p255 = scmp.lt.s32.totalorder %s17, 1
        %s256 = scalar_select %p255, %s17, 1
        %p257 = scmp.lt.s32.totalorder %s18, 1
        %s258 = scalar_select %p257, %s18, 1
        %s259 = smul.addr %s256, 2
        %s260 = sadd.s32 %s258, %s259
        %s261 = smul.addr %s260, 4
        %s262 = scalar_lea.vmem %s2, %s261
        %v264 = vld [vmem:[%s0] sm:$0x3]
        %v265 = vld [vmem:[%s233] sm:$0xf]
        %v266 = vld [vmem:[%s233 + $0x4] sm:$0xf]
        %v267 = vld [vmem:[%s233 + $0x8] sm:$0xf]
        %v268 = vld [vmem:[%s233 + $0xc] sm:$0xf]
        %v269 = vld [vmem:[%s233 + $0x10] sm:$0xf]
        %v270 = vld [vmem:[%s233 + $0x14] sm:$0xf]
        %v271 = vld [vmem:[%s233 + $0x18] sm:$0xf]
        %v272 = vld [vmem:[%s233 + $0x1c] sm:$0xf]
        %v273 = vld [vmem:[%s233 + $0x20] sm:$0xf]
        %v274 = vld [vmem:[%s233 + $0x24] sm:$0xf]
        %v275 = vld [vmem:[%s233 + $0x28] sm:$0xf]
        %v276 = vld [vmem:[%s233 + $0x2c] sm:$0xf]
        %v277 = vld [vmem:[%s233 + $0x30] sm:$0xf]
        %v278 = vld [vmem:[%s233 + $0x34] sm:$0xf]
        %v293 = vunpack.c.l.b16 %v265
        %v294 = vunpack.c.l.b16 %v266
        %v295 = vunpack.c.l.b16 %v267
        %v296 = vunpack.c.l.b16 %v268
        %v297 = vunpack.c.l.b16 %v269
        %v298 = vunpack.c.l.b16 %v270
        %v299 = vunpack.c.l.b16 %v271
        %v300 = vunpack.c.l.b16 %v272
        %v301 = vunpack.c.l.b16 %v273
        %v302 = vunpack.c.l.b16 %v274
        %v303 = vunpack.c.l.b16 %v275
        %v304 = vunpack.c.l.b16 %v276
        %v305 = vunpack.c.l.b16 %v277
        %v306 = vunpack.c.l.b16 %v278
        %v307 = vpack.c.b16 %v294, %v293
        %v308 = vpack.c.b16 %v296, %v295
        %v309 = vpack.c.b16 %v298, %v297
        %v310 = vpack.c.b16 %v300, %v299
        %v311 = vpack.c.b16 %v302, %v301
        %v312 = vpack.c.b16 %v304, %v303
        %v313 = vpack.c.b16 %v306, %v305
        %vm321 = vcmask 916480
        %v323 = vsel %vm321, %v264, 0
        %325 = vmatprep.subr.bf16.mxu0 0
        %326 = vmatpush1.bf16.msra.mxu0 0
        %327 = vmatprep.subr.bf16.mxu0 0
        %328 = vmatpush1.bf16.msra.mxu0 %v313
        %329 = vmatprep.subr.bf16.mxu0 0
        %330 = vmatpush1.bf16.msra.mxu0 %v312
        %331 = vmatprep.subr.bf16.mxu0 0
        %332 = vmatpush1.bf16.msra.mxu0 %v311
        %333 = vmatprep.subr.bf16.mxu0 0
        %334 = vmatpush1.bf16.msra.mxu0 %v310
        %335 = vmatprep.subr.bf16.mxu0 0
        %336 = vmatpush1.bf16.msra.mxu0 %v309
        %337 = vmatprep.subr.bf16.mxu0 0
        %338 = vmatpush1.bf16.msra.mxu0 %v308
        %339 = vmatprep.subr.bf16.mxu0 0
        %340 = vmatpush1.bf16.msra.mxu0 %v307
        %341 = vmatprep.subr.bf16.mxu0 0
        %342 = vmatpush2.bf16.msra.mxu0 0
        %343 = vmatprep.subr.bf16.mxu0 0
        %344 = vmatpush2.bf16.msra.mxu0 0
        %345 = vmatprep.subr.bf16.mxu0 0
        %346 = vmatpush2.bf16.msra.mxu0 0
        %347 = vmatprep.subr.bf16.mxu0 0
        %348 = vmatpush2.bf16.msra.mxu0 0
        %349 = vmatprep.subr.bf16.mxu0 0
        %350 = vmatpush2.bf16.msra.mxu0 0
        %351 = vmatprep.subr.bf16.mxu0 0
        %352 = vmatpush2.bf16.msra.mxu0 0
        %353 = vmatprep.subr.bf16.mxu0 0
        %354 = vmatpush2.bf16.msra.mxu0 0
        %355 = vmatprep.subr.bf16.mxu0 0
        %356 = vmatpush2.bf16.msra.mxu0 0
        %357 = vmatprep.mubr.bf16.mxu0 0
        %358 = vmatmul.mubr.bf16.gmra.mxu0 %v323
        %v359 = vpop.f32.mrf.mxu0
        %v360 = vadd.f32 0.0, %v359
        %v361 = vpop.f32.mrf.mxu0
        %v362 = vpop.f32.mrf.mxu0
        %v363 = vpop.f32.mrf.mxu0
        %364 = vdwg.mxu0
        %365 = vst [vmem:[%s262] sm:$0xf] %v360
        %p366 = scmp.lt.s32.totalorder %s17, 1
        %s367 = scalar_select %p366, %s17, 1
        %p368 = scmp.lt.s32.totalorder %s18, 1
        %s369 = scalar_select %p368, %s18, 1
        %s370 = smul.addr %s367, 2
        %s371 = sadd.s32 %s369, %s370
        %s372 = smul.addr %s371, 4
        %s373 = scalar_lea.vmem %s2, %s372
        // Predicated region
        $region70: #{stride_conv_wrapper.1} parent=64 // pred_check
          %p374 = pneg %p94
        $region71: #{stride_conv_wrapper.1} parent=64 // pred_check_branch
          %376 = sbr.rel (%p374) target = $region73
        $region72: #{stride_conv_wrapper.1} parent=64 // pred_region
          _
        $region73: #{stride_conv_wrapper.1} parent=64 // pred_fallthru
          _
      $region65: #{stride_conv_wrapper.1} parent=5 // pred_fallthru
        _
      %p377 = scmp.le.s32.totalorder 2, %s8
      // Predicated region
      $region74: #{stride_conv_wrapper.1} parent=5 // pred_check
        %p378 = pneg %p377
      $region75: #{stride_conv_wrapper.1} parent=5 // pred_check_branch
        %380 = sbr.rel (%p378) target = $region77
      $region76: #{stride_conv_wrapper.1} parent=5 // pred_region
        %s381 = ssub.s32 %s8, 2
        // Predicated region
        $region78: #{stride_conv_wrapper.1} parent=76 // pred_check
          %p382 = pneg %p100
        $region79: #{stride_conv_wrapper.1} parent=76 // pred_check_branch
          %384 = sbr.rel (%p382) target = $region81
        $region80: #{stride_conv_wrapper.1} parent=76 // pred_region
          %p385 = scmp.lt.s32.totalorder %s19, 1
          %s386 = scalar_select %p385, %s19, 1
          %p387 = scmp.lt.s32.totalorder %s20, 1
          %s388 = scalar_select %p387, %s20, 1
          %s389 = smul.addr %s386, 2
          %s390 = sadd.s32 %s388, %s389
          %s391 = smul.addr %s390, 4
          %s392 = scalar_lea.vmem %s2, %s391
        $region81: #{stride_conv_wrapper.1} parent=76 // pred_fallthru
          _
      $region77: #{stride_conv_wrapper.1} parent=5 // pred_fallthru
        _
    $region6: #{stride_conv_wrapper.1} parent=1 // loop_footer
      %s12 = sadd.s32 1, %s8
    $region7: #{stride_conv_wrapper.1} parent=1 // loop_footer_branch
      %7 = sbr.rel target = $region3
    $region8: #{stride_conv_wrapper.1} parent=1 // loop_exit
      _

</llo_original>
